<compile_context>
chip_gen: v7x
topology: tpu7x:2x2x1
jax: 0.10.0
libtpu: 0.0.40
codegen_flags: <defaults>
</compile_context>

<pallas_src>
import functools

import jax
import jax.numpy as jnp
import numpy as np
from jax.experimental import pallas as pl
from jax.experimental.pallas import tpu as pltpu


def convkb_kernel(x_ref, wf_ref, wc_ref, bc_ref, bf_ref, out_ref, *,
                  compute_dtype, strip):
    # x_ref : (L, D, TB)   VMEM  storage dtype -- batch on the 128-lane axis
    # wf_ref: (O, D, 1)    VMEM  f32           -- fc weight, sublane-major column per o
    # wc_ref: (O, L)       SMEM  f32           -- conv weight scalars
    # bc_ref: (O,)         SMEM  f32           -- conv bias scalars
    # bf_ref: (1,)         SMEM  f32           -- fc bias scalar
    # out_ref: (1, TB)     VMEM  f32           -- lane-dense output slab
    L, D, TB = x_ref.shape
    O = wf_ref.shape[0]
    cdt = compute_dtype

    # Hoist all SMEM scalar reads (and their casts) out of the strip / o loops.
    wc = [[wc_ref[o, l].astype(cdt) for l in range(L)] for o in range(O)]
    bc = [bc_ref[o].astype(cdt) for o in range(O)]
    bf = bf_ref[0]
    zero = jnp.zeros((), cdt)

    # Lane strips bound the live ranges of the accumulator and the hoisted x planes
    # (<= ~40 vregs live per strip) -> no spills even at large TB.
    for j in range(TB // strip):
        sl = slice(j * strip, (j + 1) * strip)          # static, 128-aligned lane slice
        xs = [x_ref[l, :, sl].astype(cdt) for l in range(L)]   # (D, strip) each

        acc = jnp.zeros((D, strip), jnp.float32)
        for o in range(O):                  # unrolled: O*L broadcast FMAs on the VPU
            conv_o = xs[0] * wc[o][0]
            for l in range(1, L):
                conv_o = conv_o + xs[l] * wc[o][l]
            act = jnp.maximum(conv_o + bc[o], zero).astype(jnp.float32)
            # TODO(synk): nn.Dropout omitted (inference / eval semantics -> identity).
            acc = acc + act * wf_ref[o]     # (D, 1) f32 column, broadcast over lanes

        # Reduce over D (sublane axis, NEVER the lane/batch axis) -> (1, strip).
        out_ref[:, sl] = jnp.sum(acc, axis=0, keepdims=True) + bf


def _round_up(a, m):
    return (a + m - 1) // m * m


def _cdiv(a, b):
    return (a + b - 1) // b


def convkb_forward(x, conv_w, conv_b, fc_w, fc_b, *, block_b=4096,
                   storage_dtype=jnp.bfloat16, compute_dtype=jnp.float32):
    """ConvKB forward.

    x: (B, L, D).  conv_w: (O, 1, 1, L), conv_b: (O,), fc_w: (1, O*D), fc_b: (1,).
    Returns (B, 1) float32.

    storage_dtype: dtype used for the relayout + kernel DMA of x (bf16 halves HBM
        traffic on every TPU generation; pass jnp.float32 for bit-faithful inputs).
    compute_dtype: dtype of the conv FMA chain (bf16 = packed-VALU win on v6e/v7x;
        the fc accumulation and final D reduction always run in f32).
    """
    B, L, D = x.shape
    O = conv_w.shape[0]

    wc = conv_w.reshape(O, L).astype(jnp.float32)
    bc = conv_b.reshape(O).astype(jnp.float32)
    # PyTorch flattens the (B, O, D) activation o-major, so fc weight index is o*D + d.
    # Pre-shape to (O, D, 1): each per-o factor is already a sublane-major column.
    wf = fc_w.reshape(O, D, 1).astype(jnp.float32)
    bf = fc_b.reshape(1).astype(jnp.float32)

    # Batch tiling: lanes want multiples of 128; use >=2 tiles whenever B allows so
    # dimension_semantics=("parallel",) can shard tiles across both v7x TensorCores.
    B128 = _round_up(B, 128)
    n_tiles = _cdiv(B128, block_b)
    if n_tiles < 2 and B128 >= 256:
        n_tiles = 2
    TB = _round_up(_cdiv(B128, n_tiles), 128)
    B_pad = TB * n_tiles
    strip = 256 if TB % 256 == 0 else 128

    # One fused relayout pass at the narrow storage dtype: cast + pad the batch axis
    # *before* transposing so XLA folds the pad into the single transpose copy.
    xs = x.astype(storage_dtype)
    if B_pad != B:
        xs = jnp.pad(xs, ((0, B_pad - B), (0, 0), (0, 0)))
    xt = jnp.transpose(xs, (1, 2, 0))                     # (L, D, B_pad)
    # TODO(synk): if the upstream producer can emit x already laid out as (L, D, B),
    # pass it straight in and this relayout disappears entirely.

    kernel = functools.partial(convkb_kernel, compute_dtype=compute_dtype, strip=strip)

    out = pl.pallas_call(
        kernel,
        out_shape=jax.ShapeDtypeStruct((1, B_pad), jnp.float32),
        grid=(n_tiles,),
        in_specs=[
            pl.BlockSpec((L, D, TB), lambda i: (0, 0, i)),       # x: tiled over batch lanes
            pl.BlockSpec((O, D, 1), lambda i: (0, 0, 0)),        # fc weight: VMEM resident
            pl.BlockSpec(memory_space=pltpu.MemorySpace.SMEM),   # conv weight scalars
            pl.BlockSpec(memory_space=pltpu.MemorySpace.SMEM),   # conv bias scalars
            pl.BlockSpec(memory_space=pltpu.MemorySpace.SMEM),   # fc bias scalar
        ],
        out_specs=pl.BlockSpec((1, TB), lambda i: (0, i)),       # lane-dense output slab
        compiler_params=pltpu.CompilerParams(
            dimension_semantics=("parallel",),       # batch tiles are independent
            vmem_limit_bytes=32 * 1024 * 1024,       # explicit; tiles stay far below
        ),
    )(xt, wf, wc, bc, bf)

    return out[0, :B][:, None]                               # back to (B, 1) f32


def _xavier_uniform(key, shape, fan_in, fan_out, gain):
    bound = gain * np.sqrt(6.0 / (fan_in + fan_out))
    return jax.random.uniform(key, shape, jnp.float32, -bound, bound)


def _reference(x, conv_w, conv_b, fc_w, fc_b):
    # Pure-JAX mirror of the PyTorch forward (f32; elementwise fc avoids MXU rounding).
    B, L, D = x.shape
    O = conv_w.shape[0]
    wc = conv_w.reshape(O, L)
    conv = jnp.einsum("bld,ol->bod", x, wc,
                      precision=jax.lax.Precision.HIGHEST) + conv_b[None, :, None]
    act = jnp.maximum(conv, 0.0)
    flat = act.reshape(B, O * D)
    return jnp.sum(flat * fc_w[0][None, :], axis=-1, keepdims=True) + fc_b[None, :]


if __name__ == "__main__":
    # ConvKB hyperparameters: D=32 embedding dim, L=3 (head, relation, tail), O=8.
    input_dim = 32
    input_seq_len = 3
    in_channels = 1
    out_channels = 8

    key = jax.random.PRNGKey(0)
    k_x, k_x2, k_cw, k_cb, k_fw, k_fb = jax.random.split(key, 6)

    gain = 1.414
    conv_w = _xavier_uniform(k_cw, (out_channels, in_channels, 1, input_seq_len),
                             fan_in=in_channels * input_seq_len,
                             fan_out=out_channels * input_seq_len, gain=gain)
    conv_b = jax.random.uniform(k_cb, (out_channels,), jnp.float32,
                                -1.0 / np.sqrt(in_channels * input_seq_len),
                                1.0 / np.sqrt(in_channels * input_seq_len))
    fc_w = _xavier_uniform(k_fw, (1, input_dim * out_channels),
                           fan_in=input_dim * out_channels, fan_out=1, gain=gain)
    fc_b = jax.random.uniform(k_fb, (1,), jnp.float32,
                              -1.0 / np.sqrt(input_dim * out_channels),
                              1.0 / np.sqrt(input_dim * out_channels))

    def run(x, storage_dtype, compute_dtype):
        fwd = jax.jit(functools.partial(
            convkb_forward, conv_w=conv_w, conv_b=conv_b, fc_w=fc_w, fc_b=fc_b,
            storage_dtype=storage_dtype, compute_dtype=compute_dtype))
        return jax.block_until_ready(fwd(x))

    # Case 1: tiny batch (single tile, single strip), exact f32 path vs f32 reference.
    x1 = jax.random.normal(k_x, (2, input_seq_len, input_dim), jnp.float32)
    out = run(x1, jnp.float32, jnp.float32)
    ref = _reference(x1, conv_w, conv_b, fc_w, fc_b)
    assert out.shape == (2, 1)
    np.testing.assert_allclose(np.asarray(out), np.asarray(ref), rtol=1e-5, atol=1e-5)

    # Case 1b: default bf16 storage / f32 compute vs reference on bf16-quantized input.
    x1_q = x1.astype(jnp.bfloat16).astype(jnp.float32)
    ref_q = _reference(x1_q, conv_w, conv_b, fc_w, fc_b)
    out = run(x1, jnp.bfloat16, jnp.float32)
    np.testing.assert_allclose(np.asarray(out), np.asarray(ref_q), rtol=1e-4, atol=1e-4)

    # Case 1c: bf16 conv-chain compute (v6e/v7x packed-VALU fast path) — smoke check.
    out = run(x1, jnp.bfloat16, jnp.bfloat16)
    np.testing.assert_allclose(np.asarray(out), np.asarray(ref_q), rtol=1e-1, atol=1e-1)

    # Case 2: ragged batch -> padding, 2 "parallel" tiles, multi-strip inner loop.
    x2 = jax.random.normal(k_x2, (1030, input_seq_len, input_dim), jnp.float32)
    out2 = run(x2, jnp.bfloat16, jnp.float32)
    ref2 = _reference(x2.astype(jnp.bfloat16).astype(jnp.float32),
                      conv_w, conv_b, fc_w, fc_b)
    assert out2.shape == (1030, 1)
    np.testing.assert_allclose(np.asarray(out2), np.asarray(ref2), rtol=1e-4, atol=1e-4)

    print("KERNEL_OK")
</pallas_src>

<mosaic_0001>
module attributes {stable_mosaic.version = 11 : i64} {
  func.func @convkb_kernel(%arg0: i32, %arg1: memref<3x32x128xf32, #tpu.memory_space<vmem>>, %arg2: memref<8x32x1xf32, #tpu.memory_space<vmem>>, %arg3: memref<8x3xf32, #tpu.memory_space<smem>>, %arg4: memref<8xf32, #tpu.memory_space<smem>>, %arg5: memref<1xf32, #tpu.memory_space<smem>>, %arg6: memref<1x128xf32, #tpu.memory_space<vmem>>) attributes {dimension_semantics = [#tpu.dimension_semantics<parallel>], iteration_bounds = array<i64: 1>, scalar_prefetch = 0 : i64, scratch_operands = 0 : i64, tpu.core_type = #tpu.core_type<tc>, window_params = [{transform_indices = @transform_0, window_bounds = array<i64: 3, 32, 128>}, {pipeline_mode = #tpu.pipeline_mode<synchronous>, transform_indices = @transform_1, window_bounds = array<i64: 8, 32, 1>}, {transform_indices = @transform_2, window_bounds = array<i64: 8, 3>}, {transform_indices = @transform_3, window_bounds = array<i64: 8>}, {transform_indices = @transform_4, window_bounds = array<i64: 1>}, {transform_indices = @transform_5, window_bounds = array<i64: 1, 128>}]} {
    %c0 = arith.constant 0 : index
    %c0_0 = arith.constant 0 : index
    %0 = memref.load %arg3[%c0, %c0_0] : memref<8x3xf32, #tpu.memory_space<smem>>
    %c0_1 = arith.constant 0 : index
    %c1 = arith.constant 1 : index
    %1 = memref.load %arg3[%c0_1, %c1] : memref<8x3xf32, #tpu.memory_space<smem>>
    %c0_2 = arith.constant 0 : index
    %c2 = arith.constant 2 : index
    %2 = memref.load %arg3[%c0_2, %c2] : memref<8x3xf32, #tpu.memory_space<smem>>
    %c1_3 = arith.constant 1 : index
    %c0_4 = arith.constant 0 : index
    %3 = memref.load %arg3[%c1_3, %c0_4] : memref<8x3xf32, #tpu.memory_space<smem>>
    %c1_5 = arith.constant 1 : index
    %c1_6 = arith.constant 1 : index
    %4 = memref.load %arg3[%c1_5, %c1_6] : memref<8x3xf32, #tpu.memory_space<smem>>
    %c1_7 = arith.constant 1 : index
    %c2_8 = arith.constant 2 : index
    %5 = memref.load %arg3[%c1_7, %c2_8] : memref<8x3xf32, #tpu.memory_space<smem>>
    %c2_9 = arith.constant 2 : index
    %c0_10 = arith.constant 0 : index
    %6 = memref.load %arg3[%c2_9, %c0_10] : memref<8x3xf32, #tpu.memory_space<smem>>
    %c2_11 = arith.constant 2 : index
    %c1_12 = arith.constant 1 : index
    %7 = memref.load %arg3[%c2_11, %c1_12] : memref<8x3xf32, #tpu.memory_space<smem>>
    %c2_13 = arith.constant 2 : index
    %c2_14 = arith.constant 2 : index
    %8 = memref.load %arg3[%c2_13, %c2_14] : memref<8x3xf32, #tpu.memory_space<smem>>
    %c3 = arith.constant 3 : index
    %c0_15 = arith.constant 0 : index
    %9 = memref.load %arg3[%c3, %c0_15] : memref<8x3xf32, #tpu.memory_space<smem>>
    %c3_16 = arith.constant 3 : index
    %c1_17 = arith.constant 1 : index
    %10 = memref.load %arg3[%c3_16, %c1_17] : memref<8x3xf32, #tpu.memory_space<smem>>
    %c3_18 = arith.constant 3 : index
    %c2_19 = arith.constant 2 : index
    %11 = memref.load %arg3[%c3_18, %c2_19] : memref<8x3xf32, #tpu.memory_space<smem>>
    %c4 = arith.constant 4 : index
    %c0_20 = arith.constant 0 : index
    %12 = memref.load %arg3[%c4, %c0_20] : memref<8x3xf32, #tpu.memory_space<smem>>
    %c4_21 = arith.constant 4 : index
    %c1_22 = arith.constant 1 : index
    %13 = memref.load %arg3[%c4_21, %c1_22] : memref<8x3xf32, #tpu.memory_space<smem>>
    %c4_23 = arith.constant 4 : index
    %c2_24 = arith.constant 2 : index
    %14 = memref.load %arg3[%c4_23, %c2_24] : memref<8x3xf32, #tpu.memory_space<smem>>
    %c5 = arith.constant 5 : index
    %c0_25 = arith.constant 0 : index
    %15 = memref.load %arg3[%c5, %c0_25] : memref<8x3xf32, #tpu.memory_space<smem>>
    %c5_26 = arith.constant 5 : index
    %c1_27 = arith.constant 1 : index
    %16 = memref.load %arg3[%c5_26, %c1_27] : memref<8x3xf32, #tpu.memory_space<smem>>
    %c5_28 = arith.constant 5 : index
    %c2_29 = arith.constant 2 : index
    %17 = memref.load %arg3[%c5_28, %c2_29] : memref<8x3xf32, #tpu.memory_space<smem>>
    %c6 = arith.constant 6 : index
    %c0_30 = arith.constant 0 : index
    %18 = memref.load %arg3[%c6, %c0_30] : memref<8x3xf32, #tpu.memory_space<smem>>
    %c6_31 = arith.constant 6 : index
    %c1_32 = arith.constant 1 : index
    %19 = memref.load %arg3[%c6_31, %c1_32] : memref<8x3xf32, #tpu.memory_space<smem>>
    %c6_33 = arith.constant 6 : index
    %c2_34 = arith.constant 2 : index
    %20 = memref.load %arg3[%c6_33, %c2_34] : memref<8x3xf32, #tpu.memory_space<smem>>
    %c7 = arith.constant 7 : index
    %c0_35 = arith.constant 0 : index
    %21 = memref.load %arg3[%c7, %c0_35] : memref<8x3xf32, #tpu.memory_space<smem>>
    %c7_36 = arith.constant 7 : index
    %c1_37 = arith.constant 1 : index
    %22 = memref.load %arg3[%c7_36, %c1_37] : memref<8x3xf32, #tpu.memory_space<smem>>
    %c7_38 = arith.constant 7 : index
    %c2_39 = arith.constant 2 : index
    %23 = memref.load %arg3[%c7_38, %c2_39] : memref<8x3xf32, #tpu.memory_space<smem>>
    %c0_40 = arith.constant 0 : index
    %24 = memref.load %arg4[%c0_40] : memref<8xf32, #tpu.memory_space<smem>>
    %c1_41 = arith.constant 1 : index
    %25 = memref.load %arg4[%c1_41] : memref<8xf32, #tpu.memory_space<smem>>
    %c2_42 = arith.constant 2 : index
    %26 = memref.load %arg4[%c2_42] : memref<8xf32, #tpu.memory_space<smem>>
    %c3_43 = arith.constant 3 : index
    %27 = memref.load %arg4[%c3_43] : memref<8xf32, #tpu.memory_space<smem>>
    %c4_44 = arith.constant 4 : index
    %28 = memref.load %arg4[%c4_44] : memref<8xf32, #tpu.memory_space<smem>>
    %c5_45 = arith.constant 5 : index
    %29 = memref.load %arg4[%c5_45] : memref<8xf32, #tpu.memory_space<smem>>
    %c6_46 = arith.constant 6 : index
    %30 = memref.load %arg4[%c6_46] : memref<8xf32, #tpu.memory_space<smem>>
    %c7_47 = arith.constant 7 : index
    %31 = memref.load %arg4[%c7_47] : memref<8xf32, #tpu.memory_space<smem>>
    %c0_48 = arith.constant 0 : index
    %32 = memref.load %arg5[%c0_48] : memref<1xf32, #tpu.memory_space<smem>>
    %c0_49 = arith.constant 0 : index
    %c0_50 = arith.constant 0 : index
    %c0_51 = arith.constant 0 : index
    %33 = vector.load %arg1[%c0_49, %c0_50, %c0_51] : memref<3x32x128xf32, #tpu.memory_space<vmem>>, vector<1x32x128xf32>
    %34 = vector.shape_cast %33 : vector<1x32x128xf32> to vector<32x128xf32>
    %c1_52 = arith.constant 1 : index
    %c0_53 = arith.constant 0 : index
    %c0_54 = arith.constant 0 : index
    %35 = vector.load %arg1[%c1_52, %c0_53, %c0_54] : memref<3x32x128xf32, #tpu.memory_space<vmem>>, vector<1x32x128xf32>
    %36 = vector.shape_cast %35 : vector<1x32x128xf32> to vector<32x128xf32>
    %c2_55 = arith.constant 2 : index
    %c0_56 = arith.constant 0 : index
    %c0_57 = arith.constant 0 : index
    %37 = vector.load %arg1[%c2_55, %c0_56, %c0_57] : memref<3x32x128xf32, #tpu.memory_space<vmem>>, vector<1x32x128xf32>
    %38 = vector.shape_cast %37 : vector<1x32x128xf32> to vector<32x128xf32>
    %cst = arith.constant 0.000000e+00 : f32
    %39 = vector.broadcast %cst : f32 to vector<32x128xf32>
    %40 = vector.broadcast %0 : f32 to vector<32x128xf32>
    %41 = arith.mulf %34, %40 : vector<32x128xf32>
    %42 = vector.broadcast %1 : f32 to vector<32x128xf32>
    %43 = arith.mulf %36, %42 : vector<32x128xf32>
    %44 = arith.addf %41, %43 : vector<32x128xf32>
    %45 = vector.broadcast %2 : f32 to vector<32x128xf32>
    %46 = arith.mulf %38, %45 : vector<32x128xf32>
    %47 = arith.addf %44, %46 : vector<32x128xf32>
    %48 = vector.broadcast %24 : f32 to vector<32x128xf32>
    %49 = arith.addf %47, %48 : vector<32x128xf32>
    %cst_58 = arith.constant 0.000000e+00 : f32
    %50 = vector.broadcast %cst_58 : f32 to vector<32x128xf32>
    %51 = arith.maximumf %49, %50 : vector<32x128xf32>
    %c0_59 = arith.constant 0 : index
    %c0_60 = arith.constant 0 : index
    %c0_61 = arith.constant 0 : index
    %52 = vector.load %arg2[%c0_59, %c0_60, %c0_61] : memref<8x32x1xf32, #tpu.memory_space<vmem>>, vector<1x32x1xf32>
    %53 = vector.shape_cast %52 : vector<1x32x1xf32> to vector<32x1xf32>
    %54 = vector.broadcast %53 : vector<32x1xf32> to vector<32x128xf32>
    %55 = arith.mulf %51, %54 : vector<32x128xf32>
    %56 = arith.addf %39, %55 : vector<32x128xf32>
    %57 = vector.broadcast %3 : f32 to vector<32x128xf32>
    %58 = arith.mulf %34, %57 : vector<32x128xf32>
    %59 = vector.broadcast %4 : f32 to vector<32x128xf32>
    %60 = arith.mulf %36, %59 : vector<32x128xf32>
    %61 = arith.addf %58, %60 : vector<32x128xf32>
    %62 = vector.broadcast %5 : f32 to vector<32x128xf32>
    %63 = arith.mulf %38, %62 : vector<32x128xf32>
    %64 = arith.addf %61, %63 : vector<32x128xf32>
    %65 = vector.broadcast %25 : f32 to vector<32x128xf32>
    %66 = arith.addf %64, %65 : vector<32x128xf32>
    %cst_62 = arith.constant 0.000000e+00 : f32
    %67 = vector.broadcast %cst_62 : f32 to vector<32x128xf32>
    %68 = arith.maximumf %66, %67 : vector<32x128xf32>
    %c1_63 = arith.constant 1 : index
    %c0_64 = arith.constant 0 : index
    %c0_65 = arith.constant 0 : index
    %69 = vector.load %arg2[%c1_63, %c0_64, %c0_65] : memref<8x32x1xf32, #tpu.memory_space<vmem>>, vector<1x32x1xf32>
    %70 = vector.shape_cast %69 : vector<1x32x1xf32> to vector<32x1xf32>
    %71 = vector.broadcast %70 : vector<32x1xf32> to vector<32x128xf32>
    %72 = arith.mulf %68, %71 : vector<32x128xf32>
    %73 = arith.addf %56, %72 : vector<32x128xf32>
    %74 = vector.broadcast %6 : f32 to vector<32x128xf32>
    %75 = arith.mulf %34, %74 : vector<32x128xf32>
    %76 = vector.broadcast %7 : f32 to vector<32x128xf32>
    %77 = arith.mulf %36, %76 : vector<32x128xf32>
    %78 = arith.addf %75, %77 : vector<32x128xf32>
    %79 = vector.broadcast %8 : f32 to vector<32x128xf32>
    %80 = arith.mulf %38, %79 : vector<32x128xf32>
    %81 = arith.addf %78, %80 : vector<32x128xf32>
    %82 = vector.broadcast %26 : f32 to vector<32x128xf32>
    %83 = arith.addf %81, %82 : vector<32x128xf32>
    %cst_66 = arith.constant 0.000000e+00 : f32
    %84 = vector.broadcast %cst_66 : f32 to vector<32x128xf32>
    %85 = arith.maximumf %83, %84 : vector<32x128xf32>
    %c2_67 = arith.constant 2 : index
    %c0_68 = arith.constant 0 : index
    %c0_69 = arith.constant 0 : index
    %86 = vector.load %arg2[%c2_67, %c0_68, %c0_69] : memref<8x32x1xf32, #tpu.memory_space<vmem>>, vector<1x32x1xf32>
    %87 = vector.shape_cast %86 : vector<1x32x1xf32> to vector<32x1xf32>
    %88 = vector.broadcast %87 : vector<32x1xf32> to vector<32x128xf32>
    %89 = arith.mulf %85, %88 : vector<32x128xf32>
    %90 = arith.addf %73, %89 : vector<32x128xf32>
    %91 = vector.broadcast %9 : f32 to vector<32x128xf32>
    %92 = arith.mulf %34, %91 : vector<32x128xf32>
    %93 = vector.broadcast %10 : f32 to vector<32x128xf32>
    %94 = arith.mulf %36, %93 : vector<32x128xf32>
    %95 = arith.addf %92, %94 : vector<32x128xf32>
    %96 = vector.broadcast %11 : f32 to vector<32x128xf32>
    %97 = arith.mulf %38, %96 : vector<32x128xf32>
    %98 = arith.addf %95, %97 : vector<32x128xf32>
    %99 = vector.broadcast %27 : f32 to vector<32x128xf32>
    %100 = arith.addf %98, %99 : vector<32x128xf32>
    %cst_70 = arith.constant 0.000000e+00 : f32
    %101 = vector.broadcast %cst_70 : f32 to vector<32x128xf32>
    %102 = arith.maximumf %100, %101 : vector<32x128xf32>
    %c3_71 = arith.constant 3 : index
    %c0_72 = arith.constant 0 : index
    %c0_73 = arith.constant 0 : index
    %103 = vector.load %arg2[%c3_71, %c0_72, %c0_73] : memref<8x32x1xf32, #tpu.memory_space<vmem>>, vector<1x32x1xf32>
    %104 = vector.shape_cast %103 : vector<1x32x1xf32> to vector<32x1xf32>
    %105 = vector.broadcast %104 : vector<32x1xf32> to vector<32x128xf32>
    %106 = arith.mulf %102, %105 : vector<32x128xf32>
    %107 = arith.addf %90, %106 : vector<32x128xf32>
    %108 = vector.broadcast %12 : f32 to vector<32x128xf32>
    %109 = arith.mulf %34, %108 : vector<32x128xf32>
    %110 = vector.broadcast %13 : f32 to vector<32x128xf32>
    %111 = arith.mulf %36, %110 : vector<32x128xf32>
    %112 = arith.addf %109, %111 : vector<32x128xf32>
    %113 = vector.broadcast %14 : f32 to vector<32x128xf32>
    %114 = arith.mulf %38, %113 : vector<32x128xf32>
    %115 = arith.addf %112, %114 : vector<32x128xf32>
    %116 = vector.broadcast %28 : f32 to vector<32x128xf32>
    %117 = arith.addf %115, %116 : vector<32x128xf32>
    %cst_74 = arith.constant 0.000000e+00 : f32
    %118 = vector.broadcast %cst_74 : f32 to vector<32x128xf32>
    %119 = arith.maximumf %117, %118 : vector<32x128xf32>
    %c4_75 = arith.constant 4 : index
    %c0_76 = arith.constant 0 : index
    %c0_77 = arith.constant 0 : index
    %120 = vector.load %arg2[%c4_75, %c0_76, %c0_77] : memref<8x32x1xf32, #tpu.memory_space<vmem>>, vector<1x32x1xf32>
    %121 = vector.shape_cast %120 : vector<1x32x1xf32> to vector<32x1xf32>
    %122 = vector.broadcast %121 : vector<32x1xf32> to vector<32x128xf32>
    %123 = arith.mulf %119, %122 : vector<32x128xf32>
    %124 = arith.addf %107, %123 : vector<32x128xf32>
    %125 = vector.broadcast %15 : f32 to vector<32x128xf32>
    %126 = arith.mulf %34, %125 : vector<32x128xf32>
    %127 = vector.broadcast %16 : f32 to vector<32x128xf32>
    %128 = arith.mulf %36, %127 : vector<32x128xf32>
    %129 = arith.addf %126, %128 : vector<32x128xf32>
    %130 = vector.broadcast %17 : f32 to vector<32x128xf32>
    %131 = arith.mulf %38, %130 : vector<32x128xf32>
    %132 = arith.addf %129, %131 : vector<32x128xf32>
    %133 = vector.broadcast %29 : f32 to vector<32x128xf32>
    %134 = arith.addf %132, %133 : vector<32x128xf32>
    %cst_78 = arith.constant 0.000000e+00 : f32
    %135 = vector.broadcast %cst_78 : f32 to vector<32x128xf32>
    %136 = arith.maximumf %134, %135 : vector<32x128xf32>
    %c5_79 = arith.constant 5 : index
    %c0_80 = arith.constant 0 : index
    %c0_81 = arith.constant 0 : index
    %137 = vector.load %arg2[%c5_79, %c0_80, %c0_81] : memref<8x32x1xf32, #tpu.memory_space<vmem>>, vector<1x32x1xf32>
    %138 = vector.shape_cast %137 : vector<1x32x1xf32> to vector<32x1xf32>
    %139 = vector.broadcast %138 : vector<32x1xf32> to vector<32x128xf32>
    %140 = arith.mulf %136, %139 : vector<32x128xf32>
    %141 = arith.addf %124, %140 : vector<32x128xf32>
    %142 = vector.broadcast %18 : f32 to vector<32x128xf32>
    %143 = arith.mulf %34, %142 : vector<32x128xf32>
    %144 = vector.broadcast %19 : f32 to vector<32x128xf32>
    %145 = arith.mulf %36, %144 : vector<32x128xf32>
    %146 = arith.addf %143, %145 : vector<32x128xf32>
    %147 = vector.broadcast %20 : f32 to vector<32x128xf32>
    %148 = arith.mulf %38, %147 : vector<32x128xf32>
    %149 = arith.addf %146, %148 : vector<32x128xf32>
    %150 = vector.broadcast %30 : f32 to vector<32x128xf32>
    %151 = arith.addf %149, %150 : vector<32x128xf32>
    %cst_82 = arith.constant 0.000000e+00 : f32
    %152 = vector.broadcast %cst_82 : f32 to vector<32x128xf32>
    %153 = arith.maximumf %151, %152 : vector<32x128xf32>
    %c6_83 = arith.constant 6 : index
    %c0_84 = arith.constant 0 : index
    %c0_85 = arith.constant 0 : index
    %154 = vector.load %arg2[%c6_83, %c0_84, %c0_85] : memref<8x32x1xf32, #tpu.memory_space<vmem>>, vector<1x32x1xf32>
    %155 = vector.shape_cast %154 : vector<1x32x1xf32> to vector<32x1xf32>
    %156 = vector.broadcast %155 : vector<32x1xf32> to vector<32x128xf32>
    %157 = arith.mulf %153, %156 : vector<32x128xf32>
    %158 = arith.addf %141, %157 : vector<32x128xf32>
    %159 = vector.broadcast %21 : f32 to vector<32x128xf32>
    %160 = arith.mulf %34, %159 : vector<32x128xf32>
    %161 = vector.broadcast %22 : f32 to vector<32x128xf32>
    %162 = arith.mulf %36, %161 : vector<32x128xf32>
    %163 = arith.addf %160, %162 : vector<32x128xf32>
    %164 = vector.broadcast %23 : f32 to vector<32x128xf32>
    %165 = arith.mulf %38, %164 : vector<32x128xf32>
    %166 = arith.addf %163, %165 : vector<32x128xf32>
    %167 = vector.broadcast %31 : f32 to vector<32x128xf32>
    %168 = arith.addf %166, %167 : vector<32x128xf32>
    %cst_86 = arith.constant 0.000000e+00 : f32
    %169 = vector.broadcast %cst_86 : f32 to vector<32x128xf32>
    %170 = arith.maximumf %168, %169 : vector<32x128xf32>
    %c7_87 = arith.constant 7 : index
    %c0_88 = arith.constant 0 : index
    %c0_89 = arith.constant 0 : index
    %171 = vector.load %arg2[%c7_87, %c0_88, %c0_89] : memref<8x32x1xf32, #tpu.memory_space<vmem>>, vector<1x32x1xf32>
    %172 = vector.shape_cast %171 : vector<1x32x1xf32> to vector<32x1xf32>
    %173 = vector.broadcast %172 : vector<32x1xf32> to vector<32x128xf32>
    %174 = arith.mulf %170, %173 : vector<32x128xf32>
    %175 = arith.addf %158, %174 : vector<32x128xf32>
    %cst_90 = arith.constant dense<0.000000e+00> : vector<128xf32>
    %176 = vector.multi_reduction <add>, %175, %cst_90 [0] : vector<32x128xf32> to vector<128xf32>
    %177 = vector.shape_cast %176 : vector<128xf32> to vector<1x128xf32>
    %178 = vector.broadcast %32 : f32 to vector<1x128xf32>
    %179 = arith.addf %177, %178 : vector<1x128xf32>
    %c0_91 = arith.constant 0 : index
    %c0_92 = arith.constant 0 : index
    %180 = vector.load %arg6[%c0_91, %c0_92] : memref<1x128xf32, #tpu.memory_space<vmem>>, vector<1x128xf32>
    tpu.vector_store %arg6[%c0_91, %c0_92], %179 {strides = array<i32>} : memref<1x128xf32, #tpu.memory_space<vmem>>, vector<1x128xf32>,
    return
  }
  func.func @transform_0(%arg0: i32) -> (i32, i32, i32) {
    %c0_i32 = arith.constant 0 : i32
    %c0_i32_0 = arith.constant 0 : i32
    %c0_i32_1 = arith.constant 0 : i32
    return %c0_i32, %c0_i32_0, %arg0 : i32, i32, i32
  }
  func.func @transform_1(%arg0: i32) -> (i32, i32, i32) {
    %c0_i32 = arith.constant 0 : i32
    %c0_i32_0 = arith.constant 0 : i32
    %c0_i32_1 = arith.constant 0 : i32
    %c0_i32_2 = arith.constant 0 : i32
    return %c0_i32, %c0_i32_0, %c0_i32_1 : i32, i32, i32
  }
  func.func @transform_2(%arg0: i32) -> (i32, i32) {
    %c0_i32 = arith.constant 0 : i32
    %c0_i32_0 = arith.constant 0 : i32
    %c0_i32_1 = arith.constant 0 : i32
    return %c0_i32, %c0_i32_0 : i32, i32
  }
  func.func @transform_3(%arg0: i32) -> i32 {
    %c0_i32 = arith.constant 0 : i32
    %c0_i32_0 = arith.constant 0 : i32
    return %c0_i32 : i32
  }
  func.func @transform_4(%arg0: i32) -> i32 {
    %c0_i32 = arith.constant 0 : i32
    %c0_i32_0 = arith.constant 0 : i32
    return %c0_i32 : i32
  }
  func.func @transform_5(%arg0: i32) -> (i32, i32) {
    %c0_i32 = arith.constant 0 : i32
    %c0_i32_0 = arith.constant 0 : i32
    return %c0_i32, %arg0 : i32, i32
  }
}

</mosaic_0001>

<llo_original>
// kernel: convkb_forward.1
$region0: #{convkb_forward.1}
  #allocation0 [shape = 'u32[]', space=smem, size = 0x4, offset = 0x4, fixed_abs, tag = 'smem constant byte address 0x4 - core index']
  #allocation1 [shape = 'u32[144,128]{1,0:T(1,128)}', space=vmem, size = 0x12000, scoped, tag = 'internal scratch']
  #allocation2 [shape = 'f32[1]{0:T(128)S(6)}', space=smem, size = 0x200, scoped, tag = 'scoped memory for convkb_forward.1']
  %s0 = inlined_call_operand.vmem [shape: f32[3,32,128], index: 0, kind: input, shape index: {}]
  %s1 = inlined_call_operand.vmem [shape: f32[8,32,1], index: 1, kind: input, shape index: {}]
  %s2 = inlined_call_operand.vmem [shape: f32[8,3], index: 2, kind: input, shape index: {}]
  %s3 = inlined_call_operand.vmem [shape: f32[8], index: 3, kind: input, shape index: {}]
  %s4 = inlined_call_operand.<no memory space> [shape: f32[1], index: 4, kind: input, shape index: {}]
  %s5 = inlined_call_operand.vmem [shape: f32[1,128], index: 5, kind: output, shape index: {}]
  %s6 = sld [smem:[#allocation0]]
  $region38: #{convkb_forward.1} parent=0
    _
  %s8 = ssub.s32 1, %s6
  %s9 = scalar_select 0, %s8, %s6
  %10 = sst [smem:[#allocation2]] %s4
  $region1: #{convkb_forward.1} parent=0
    #allocation3 [shape = 'u8[4096]{0}', space=smem, size = 0x1000, scoped, tag = 'input window, operand 2, single buffered']
    #allocation4 [shape = 's32[1]{0}', space=sflag, size = 0x4, scoped, tag = 'scoped memory for convkb_forward.1']
    #allocation5 [shape = 'u8[512]{0}', space=smem, size = 0x200, scoped, tag = 'input window, operand 3, single buffered']
    #allocation6 [shape = 's32[1]{0}', space=sflag, size = 0x4, scoped, tag = 'scoped memory for convkb_forward.1']
    %11 = vsyncpa [#allocation4], 0
    %12 = vsyncpa [#allocation6], 0
    // Predicated region
    $region2: #{convkb_forward.1} parent=1 // pred_check
      _
    $region3: #{convkb_forward.1} parent=1 // pred_check_branch
      %14 = sbr.rel (0) target = $region5
    $region4: #{convkb_forward.1} parent=1 // pred_region
      _
    $region5: #{convkb_forward.1} parent=1 // pred_fallthru
      _
    // Predicated region
    $region6: #{convkb_forward.1} parent=1 // pred_check
      _
    $region7: #{convkb_forward.1} parent=1 // pred_check_branch
      %16 = sbr.rel (0) target = $region9
    $region8: #{convkb_forward.1} parent=1 // pred_region
      _
    $region9: #{convkb_forward.1} parent=1 // pred_fallthru
      _
    // Predicated region
    $region10: #{convkb_forward.1} parent=1 // pred_check
      _
    $region11: #{convkb_forward.1} parent=1 // pred_check_branch
      %18 = sbr.rel (0) target = $region13
    $region12: #{convkb_forward.1} parent=1 // pred_region
      %s20 = ssub.s32 128, 128
      %21 = vsyncadd [#allocation4], %s20
      %s23 = sshll.u32 %s2, 4
      %s24 = int_to_ptr.vmem [resolvable:$true] %s23
      %26 = dma.vmem_to_smem %s24, 128, [#allocation3], [#allocation4]
    $region13: #{convkb_forward.1} parent=1 // pred_fallthru
      _
    // Predicated region
    $region14: #{convkb_forward.1} parent=1 // pred_check
      _
    $region15: #{convkb_forward.1} parent=1 // pred_check_branch
      %28 = sbr.rel (0) target = $region17
    $region16: #{convkb_forward.1} parent=1 // pred_region
      %s30 = ssub.s32 16, 16
      %31 = vsyncadd [#allocation6], %s30
      %s33 = sshll.u32 %s3, 4
      %s34 = int_to_ptr.vmem [resolvable:$true] %s33
      %36 = dma.vmem_to_smem %s34, 16, [#allocation5], [#allocation6]
    $region17: #{convkb_forward.1} parent=1 // pred_fallthru
      _
    // Predicated region
    $region18: #{convkb_forward.1} parent=1 // pred_check
      _
    $region19: #{convkb_forward.1} parent=1 // pred_check_branch
      %38 = sbr.rel (0) target = $region21
    $region20: #{convkb_forward.1} parent=1 // pred_region
      _
    $region21: #{convkb_forward.1} parent=1 // pred_fallthru
      _
    // Predicated region
    $region22: #{convkb_forward.1} parent=1 // pred_check
      _
    $region23: #{convkb_forward.1} parent=1 // pred_check_branch
      %40 = sbr.rel (0) target = $region25
    $region24: #{convkb_forward.1} parent=1 // pred_region
      %41 = dma.done [#allocation4], 128
    $region25: #{convkb_forward.1} parent=1 // pred_fallthru
      _
    // Predicated region
    $region26: #{convkb_forward.1} parent=1 // pred_check
      _
    $region27: #{convkb_forward.1} parent=1 // pred_check_branch
      %43 = sbr.rel (0) target = $region29
    $region28: #{convkb_forward.1} parent=1 // pred_region
      %44 = dma.done [#allocation6], 16
    $region29: #{convkb_forward.1} parent=1 // pred_fallthru
      _
    %45 = sfence
    %s46 = sld [smem:[#allocation3]]
    %s47 = sld [smem:[#allocation3 + $0x1]]
    %s48 = sld [smem:[#allocation3 + $0x2]]
    %s49 = sld [smem:[#allocation3 + $0x80]]
    %s50 = sld [smem:[#allocation3 + $0x81]]
    %s51 = sld [smem:[#allocation3 + $0x82]]
    %s52 = sld [smem:[#allocation3 + $0x100]]
    %s53 = sld [smem:[#allocation3 + $0x101]]
    %s54 = sld [smem:[#allocation3 + $0x102]]
    %s55 = sld [smem:[#allocation3 + $0x180]]
    %s56 = sld [smem:[#allocation3 + $0x181]]
    %s57 = sld [smem:[#allocation3 + $0x182]]
    %s58 = sld [smem:[#allocation3 + $0x200]]
    %s59 = sld [smem:[#allocation3 + $0x201]]
    %s60 = sld [smem:[#allocation3 + $0x202]]
    %s61 = sld [smem:[#allocation3 + $0x280]]
    %s62 = sld [smem:[#allocation3 + $0x281]]
    %s63 = sld [smem:[#allocation3 + $0x282]]
    %s64 = sld [smem:[#allocation3 + $0x300]]
    %s65 = sld [smem:[#allocation3 + $0x301]]
    %s66 = sld [smem:[#allocation3 + $0x302]]
    %s67 = sld [smem:[#allocation3 + $0x380]]
    %s68 = sld [smem:[#allocation3 + $0x381]]
    %s69 = sld [smem:[#allocation3 + $0x382]]
    %s70 = sld [smem:[#allocation5]]
    %s71 = sld [smem:[#allocation5 + $0x1]]
    %s72 = sld [smem:[#allocation5 + $0x2]]
    %s73 = sld [smem:[#allocation5 + $0x3]]
    %s74 = sld [smem:[#allocation5 + $0x4]]
    %s75 = sld [smem:[#allocation5 + $0x5]]
    %s76 = sld [smem:[#allocation5 + $0x6]]
    %s77 = sld [smem:[#allocation5 + $0x7]]
    %s78 = sld [smem:[#allocation2]]
    %v79 = vld [vmem:[%s0] sm:$0xff]
    %v80 = vld [vmem:[%s0 + $0x8] sm:$0xff]
    %v81 = vld [vmem:[%s0 + $0x10] sm:$0xff]
    %v82 = vld [vmem:[%s0 + $0x18] sm:$0xff]
    %s83 = scalar_lea.vmem %s0, 32
    %v84 = vld [vmem:[%s83] sm:$0xff]
    %v85 = vld [vmem:[%s83 + $0x8] sm:$0xff]
    %v86 = vld [vmem:[%s83 + $0x10] sm:$0xff]
    %v87 = vld [vmem:[%s83 + $0x18] sm:$0xff]
    %s88 = scalar_lea.vmem %s0, 64
    %v89 = vld [vmem:[%s88] sm:$0xff]
    %v90 = vld [vmem:[%s88 + $0x8] sm:$0xff]
    %v91 = vld [vmem:[%s88 + $0x10] sm:$0xff]
    %v92 = vld [vmem:[%s88 + $0x18] sm:$0xff]
    %v93 = vstv %s46
    %v94 = vmul.f32 %v79, %v93
    %v95 = vmul.f32 %v80, %v93
    %v96 = vmul.f32 %v81, %v93
    %v97 = vmul.f32 %v82, %v93
    %v98 = vstv %s47
    %v99 = vmul.f32 %v84, %v98
    %v100 = vmul.f32 %v85, %v98
    %v101 = vmul.f32 %v86, %v98
    %v102 = vmul.f32 %v87, %v98
    %v103 = vadd.f32 %v94, %v99
    %v104 = vadd.f32 %v95, %v100
    %v105 = vadd.f32 %v96, %v101
    %v106 = vadd.f32 %v97, %v102
    %v107 = vstv %s48
    %v108 = vmul.f32 %v89, %v107
    %v109 = vmul.f32 %v90, %v107
    %v110 = vmul.f32 %v91, %v107
    %v111 = vmul.f32 %v92, %v107
    %v112 = vadd.f32 %v103, %v108
    %v113 = vadd.f32 %v104, %v109
    %v114 = vadd.f32 %v105, %v110
    %v115 = vadd.f32 %v106, %v111
    %v116 = vstv %s70
    %v117 = vadd.f32 %v112, %v116
    %v118 = vadd.f32 %v113, %v116
    %v119 = vadd.f32 %v114, %v116
    %v120 = vadd.f32 %v115, %v116
    %v121 = vmax.f32 %v117, 0.0
    %v122 = vmax.f32 %v118, 0.0
    %v123 = vmax.f32 %v119, 0.0
    %v124 = vmax.f32 %v120, 0.0
    %v125 = vld [vmem:[%s1] sm:$0xff]
    %v126 = vld [vmem:[%s1 + $0x8] sm:$0xff]
    %v127 = vld [vmem:[%s1 + $0x10] sm:$0xff]
    %v128 = vld [vmem:[%s1 + $0x18] sm:$0xff]
    %130 = vset.pattern.permute.xlu0 0
    %131 = vperm.xlu0 %130, %v125
    %v132 = vpop.permute.xlu0 %131
    %135 = vset.pattern.permute.xlu0 0
    %136 = vperm.xlu0 %135, %v126
    %v137 = vpop.permute.xlu0 %136
    %140 = vset.pattern.permute.xlu0 0
    %141 = vperm.xlu0 %140, %v127
    %v142 = vpop.permute.xlu0 %141
    %145 = vset.pattern.permute.xlu0 0
    %146 = vperm.xlu0 %145, %v128
    %v147 = vpop.permute.xlu0 %146
    %v149 = vmul.f32 %v121, %v132
    %v150 = vmul.f32 %v122, %v137
    %v151 = vmul.f32 %v123, %v142
    %v152 = vmul.f32 %v124, %v147
    %v153 = vadd.f32 %v149, 0.0
    %v154 = vadd.f32 %v150, 0.0
    %v155 = vadd.f32 %v151, 0.0
    %v156 = vadd.f32 %v152, 0.0
    %v157 = vstv %s49
    %v158 = vmul.f32 %v79, %v157
    %v159 = vmul.f32 %v80, %v157
    %v160 = vmul.f32 %v81, %v157
    %v161 = vmul.f32 %v82, %v157
    %v162 = vstv %s50
    %v163 = vmul.f32 %v84, %v162
    %v164 = vmul.f32 %v85, %v162
    %v165 = vmul.f32 %v86, %v162
    %v166 = vmul.f32 %v87, %v162
    %v167 = vadd.f32 %v158, %v163
    %v168 = vadd.f32 %v159, %v164
    %v169 = vadd.f32 %v160, %v165
    %v170 = vadd.f32 %v161, %v166
    %v171 = vstv %s51
    %v172 = vmul.f32 %v89, %v171
    %v173 = vmul.f32 %v90, %v171
    %v174 = vmul.f32 %v91, %v171
    %v175 = vmul.f32 %v92, %v171
    %v176 = vadd.f32 %v167, %v172
    %v177 = vadd.f32 %v168, %v173
    %v178 = vadd.f32 %v169, %v174
    %v179 = vadd.f32 %v170, %v175
    %v180 = vstv %s71
    %v181 = vadd.f32 %v176, %v180
    %v182 = vadd.f32 %v177, %v180
    %v183 = vadd.f32 %v178, %v180
    %v184 = vadd.f32 %v179, %v180
    %v185 = vmax.f32 %v181, 0.0
    %v186 = vmax.f32 %v182, 0.0
    %v187 = vmax.f32 %v183, 0.0
    %v188 = vmax.f32 %v184, 0.0
    %s189 = scalar_lea.vmem %s1, 32
    %v190 = vld [vmem:[%s189] sm:$0xff]
    %v191 = vld [vmem:[%s189 + $0x8] sm:$0xff]
    %v192 = vld [vmem:[%s189 + $0x10] sm:$0xff]
    %v193 = vld [vmem:[%s189 + $0x18] sm:$0xff]
    %195 = vset.pattern.permute.xlu0 0
    %196 = vperm.xlu0 %195, %v190
    %v197 = vpop.permute.xlu0 %196
    %200 = vset.pattern.permute.xlu0 0
    %201 = vperm.xlu0 %200, %v191
    %v202 = vpop.permute.xlu0 %201
    %205 = vset.pattern.permute.xlu0 0
    %206 = vperm.xlu0 %205, %v192
    %v207 = vpop.permute.xlu0 %206
    %210 = vset.pattern.permute.xlu0 0
    %211 = vperm.xlu0 %210, %v193
    %v212 = vpop.permute.xlu0 %211
    %v214 = vmul.f32 %v185, %v197
    %v215 = vmul.f32 %v186, %v202
    %v216 = vmul.f32 %v187, %v207
    %v217 = vmul.f32 %v188, %v212
    %v218 = vadd.f32 %v153, %v214
    %v219 = vadd.f32 %v154, %v215
    %v220 = vadd.f32 %v155, %v216
    %v221 = vadd.f32 %v156, %v217
    %v222 = vstv %s52
    %v223 = vmul.f32 %v79, %v222
    %v224 = vmul.f32 %v80, %v222
    %v225 = vmul.f32 %v81, %v222
    %v226 = vmul.f32 %v82, %v222
    %v227 = vstv %s53
    %v228 = vmul.f32 %v84, %v227
    %v229 = vmul.f32 %v85, %v227
    %v230 = vmul.f32 %v86, %v227
    %v231 = vmul.f32 %v87, %v227
    %v232 = vadd.f32 %v223, %v228
    %v233 = vadd.f32 %v224, %v229
    %v234 = vadd.f32 %v225, %v230
    %v235 = vadd.f32 %v226, %v231
    %v236 = vstv %s54
    %v237 = vmul.f32 %v89, %v236
    %v238 = vmul.f32 %v90, %v236
    %v239 = vmul.f32 %v91, %v236
    %v240 = vmul.f32 %v92, %v236
    %v241 = vadd.f32 %v232, %v237
    %v242 = vadd.f32 %v233, %v238
    %v243 = vadd.f32 %v234, %v239
    %v244 = vadd.f32 %v235, %v240
    %v245 = vstv %s72
    %v246 = vadd.f32 %v241, %v245
    %v247 = vadd.f32 %v242, %v245
    %v248 = vadd.f32 %v243, %v245
    %v249 = vadd.f32 %v244, %v245
    %v250 = vmax.f32 %v246, 0.0
    %v251 = vmax.f32 %v247, 0.0
    %v252 = vmax.f32 %v248, 0.0
    %v253 = vmax.f32 %v249, 0.0
    %s254 = scalar_lea.vmem %s1, 64
    %v255 = vld [vmem:[%s254] sm:$0xff]
    %v256 = vld [vmem:[%s254 + $0x8] sm:$0xff]
    %v257 = vld [vmem:[%s254 + $0x10] sm:$0xff]
    %v258 = vld [vmem:[%s254 + $0x18] sm:$0xff]
    %260 = vset.pattern.permute.xlu0 0
    %261 = vperm.xlu0 %260, %v255
    %v262 = vpop.permute.xlu0 %261
    %265 = vset.pattern.permute.xlu0 0
    %266 = vperm.xlu0 %265, %v256
    %v267 = vpop.permute.xlu0 %266
    %270 = vset.pattern.permute.xlu0 0
    %271 = vperm.xlu0 %270, %v257
    %v272 = vpop.permute.xlu0 %271
    %275 = vset.pattern.permute.xlu0 0
    %276 = vperm.xlu0 %275, %v258
    %v277 = vpop.permute.xlu0 %276
    %v279 = vmul.f32 %v250, %v262
    %v280 = vmul.f32 %v251, %v267
    %v281 = vmul.f32 %v252, %v272
    %v282 = vmul.f32 %v253, %v277
    %v283 = vadd.f32 %v218, %v279
    %v284 = vadd.f32 %v219, %v280
    %v285 = vadd.f32 %v220, %v281
    %v286 = vadd.f32 %v221, %v282
    %v287 = vstv %s55
    %v288 = vmul.f32 %v79, %v287
    %v289 = vmul.f32 %v80, %v287
    %v290 = vmul.f32 %v81, %v287
    %v291 = vmul.f32 %v82, %v287
    %v292 = vstv %s56
    %v293 = vmul.f32 %v84, %v292
    %v294 = vmul.f32 %v85, %v292
    %v295 = vmul.f32 %v86, %v292
    %v296 = vmul.f32 %v87, %v292
    %v297 = vadd.f32 %v288, %v293
    %v298 = vadd.f32 %v289, %v294
    %v299 = vadd.f32 %v290, %v295
    %v300 = vadd.f32 %v291, %v296
    %v301 = vstv %s57
    %v302 = vmul.f32 %v89, %v301
    %v303 = vmul.f32 %v90, %v301
    %v304 = vmul.f32 %v91, %v301
    %v305 = vmul.f32 %v92, %v301
    %v306 = vadd.f32 %v297, %v302
    %v307 = vadd.f32 %v298, %v303
    %v308 = vadd.f32 %v299, %v304
    %v309 = vadd.f32 %v300, %v305
    %v310 = vstv %s73
    %v311 = vadd.f32 %v306, %v310
    %v312 = vadd.f32 %v307, %v310
    %v313 = vadd.f32 %v308, %v310
    %v314 = vadd.f32 %v309, %v310
    %v315 = vmax.f32 %v311, 0.0
    %v316 = vmax.f32 %v312, 0.0
    %v317 = vmax.f32 %v313, 0.0
    %v318 = vmax.f32 %v314, 0.0
    %s319 = scalar_lea.vmem %s1, 96
    %v320 = vld [vmem:[%s319] sm:$0xff]
    %v321 = vld [vmem:[%s319 + $0x8] sm:$0xff]
    %v322 = vld [vmem:[%s319 + $0x10] sm:$0xff]
    %v323 = vld [vmem:[%s319 + $0x18] sm:$0xff]
    %325 = vset.pattern.permute.xlu0 0
    %326 = vperm.xlu0 %325, %v320
    %v327 = vpop.permute.xlu0 %326
    %330 = vset.pattern.permute.xlu0 0
    %331 = vperm.xlu0 %330, %v321
    %v332 = vpop.permute.xlu0 %331
    %335 = vset.pattern.permute.xlu0 0
    %336 = vperm.xlu0 %335, %v322
    %v337 = vpop.permute.xlu0 %336
    %340 = vset.pattern.permute.xlu0 0
    %341 = vperm.xlu0 %340, %v323
    %v342 = vpop.permute.xlu0 %341
    %v344 = vmul.f32 %v315, %v327
    %v345 = vmul.f32 %v316, %v332
    %v346 = vmul.f32 %v317, %v337
    %v347 = vmul.f32 %v318, %v342
    %v348 = vadd.f32 %v283, %v344
    %v349 = vadd.f32 %v284, %v345
    %v350 = vadd.f32 %v285, %v346
    %v351 = vadd.f32 %v286, %v347
    %v352 = vstv %s58
    %v353 = vmul.f32 %v79, %v352
    %v354 = vmul.f32 %v80, %v352
    %v355 = vmul.f32 %v81, %v352
    %v356 = vmul.f32 %v82, %v352
    %v357 = vstv %s59
    %v358 = vmul.f32 %v84, %v357
    %v359 = vmul.f32 %v85, %v357
    %v360 = vmul.f32 %v86, %v357
    %v361 = vmul.f32 %v87, %v357
    %v362 = vadd.f32 %v353, %v358
    %v363 = vadd.f32 %v354, %v359
    %v364 = vadd.f32 %v355, %v360
    %v365 = vadd.f32 %v356, %v361
    %v366 = vstv %s60
    %v367 = vmul.f32 %v89, %v366
    %v368 = vmul.f32 %v90, %v366
    %v369 = vmul.f32 %v91, %v366
    %v370 = vmul.f32 %v92, %v366
    %v371 = vadd.f32 %v362, %v367
    %v372 = vadd.f32 %v363, %v368
    %v373 = vadd.f32 %v364, %v369
    %v374 = vadd.f32 %v365, %v370
    %v375 = vstv %s74
    %v376 = vadd.f32 %v371, %v375
    %v377 = vadd.f32 %v372, %v375
    %v378 = vadd.f32 %v373, %v375
    %v379 = vadd.f32 %v374, %v375
    %v380 = vmax.f32 %v376, 0.0
    %v381 = vmax.f32 %v377, 0.0
    %v382 = vmax.f32 %v378, 0.0
    %v383 = vmax.f32 %v379, 0.0
    %s384 = scalar_lea.vmem %s1, 128
    %v385 = vld [vmem:[%s384] sm:$0xff]
    %v386 = vld [vmem:[%s384 + $0x8] sm:$0xff]
    %v387 = vld [vmem:[%s384 + $0x10] sm:$0xff]
    %v388 = vld [vmem:[%s384 + $0x18] sm:$0xff]
    %390 = vset.pattern.permute.xlu0 0
    %391 = vperm.xlu0 %390, %v385
    %v392 = vpop.permute.xlu0 %391
    %395 = vset.pattern.permute.xlu0 0
    %396 = vperm.xlu0 %395, %v386
    %v397 = vpop.permute.xlu0 %396
    %400 = vset.pattern.permute.xlu0 0
    %401 = vperm.xlu0 %400, %v387
    %v402 = vpop.permute.xlu0 %401
    %405 = vset.pattern.permute.xlu0 0
    %406 = vperm.xlu0 %405, %v388
    %v407 = vpop.permute.xlu0 %406
    %v409 = vmul.f32 %v380, %v392
    %v410 = vmul.f32 %v381, %v397
    %v411 = vmul.f32 %v382, %v402
    %v412 = vmul.f32 %v383, %v407
    %v413 = vadd.f32 %v348, %v409
    %v414 = vadd.f32 %v349, %v410
    %v415 = vadd.f32 %v350, %v411
    %v416 = vadd.f32 %v351, %v412
    %v417 = vstv %s61
    %v418 = vmul.f32 %v79, %v417
    %v419 = vmul.f32 %v80, %v417
    %v420 = vmul.f32 %v81, %v417
    %v421 = vmul.f32 %v82, %v417
    %v422 = vstv %s62
    %v423 = vmul.f32 %v84, %v422
    %v424 = vmul.f32 %v85, %v422
    %v425 = vmul.f32 %v86, %v422
    %v426 = vmul.f32 %v87, %v422
    %v427 = vadd.f32 %v418, %v423
    %v428 = vadd.f32 %v419, %v424
    %v429 = vadd.f32 %v420, %v425
    %v430 = vadd.f32 %v421, %v426
    %v431 = vstv %s63
    %v432 = vmul.f32 %v89, %v431
    %v433 = vmul.f32 %v90, %v431
    %v434 = vmul.f32 %v91, %v431
    %v435 = vmul.f32 %v92, %v431
    %v436 = vadd.f32 %v427, %v432
    %v437 = vadd.f32 %v428, %v433
    %v438 = vadd.f32 %v429, %v434
    %v439 = vadd.f32 %v430, %v435
    %v440 = vstv %s75
    %v441 = vadd.f32 %v436, %v440
    %v442 = vadd.f32 %v437, %v440
    %v443 = vadd.f32 %v438, %v440
    %v444 = vadd.f32 %v439, %v440
    %v445 = vmax.f32 %v441, 0.0
    %v446 = vmax.f32 %v442, 0.0
    %v447 = vmax.f32 %v443, 0.0
    %v448 = vmax.f32 %v444, 0.0
    %s449 = scalar_lea.vmem %s1, 160
    %v450 = vld [vmem:[%s449] sm:$0xff]
    %v451 = vld [vmem:[%s449 + $0x8] sm:$0xff]
    %v452 = vld [vmem:[%s449 + $0x10] sm:$0xff]
    %v453 = vld [vmem:[%s449 + $0x18] sm:$0xff]
    %455 = vset.pattern.permute.xlu0 0
    %456 = vperm.xlu0 %455, %v450
    %v457 = vpop.permute.xlu0 %456
    %460 = vset.pattern.permute.xlu0 0
    %461 = vperm.xlu0 %460, %v451
    %v462 = vpop.permute.xlu0 %461
    %465 = vset.pattern.permute.xlu0 0
    %466 = vperm.xlu0 %465, %v452
    %v467 = vpop.permute.xlu0 %466
    %470 = vset.pattern.permute.xlu0 0
    %471 = vperm.xlu0 %470, %v453
    %v472 = vpop.permute.xlu0 %471
    %v474 = vmul.f32 %v445, %v457
    %v475 = vmul.f32 %v446, %v462
    %v476 = vmul.f32 %v447, %v467
    %v477 = vmul.f32 %v448, %v472
    %v478 = vadd.f32 %v413, %v474
    %v479 = vadd.f32 %v414, %v475
    %v480 = vadd.f32 %v415, %v476
    %v481 = vadd.f32 %v416, %v477
    %v482 = vstv %s64
    %v483 = vmul.f32 %v79, %v482
    %v484 = vmul.f32 %v80, %v482
    %v485 = vmul.f32 %v81, %v482
    %v486 = vmul.f32 %v82, %v482
    %v487 = vstv %s65
    %v488 = vmul.f32 %v84, %v487
    %v489 = vmul.f32 %v85, %v487
    %v490 = vmul.f32 %v86, %v487
    %v491 = vmul.f32 %v87, %v487
    %v492 = vadd.f32 %v483, %v488
    %v493 = vadd.f32 %v484, %v489
    %v494 = vadd.f32 %v485, %v490
    %v495 = vadd.f32 %v486, %v491
    %v496 = vstv %s66
    %v497 = vmul.f32 %v89, %v496
    %v498 = vmul.f32 %v90, %v496
    %v499 = vmul.f32 %v91, %v496
    %v500 = vmul.f32 %v92, %v496
    %v501 = vadd.f32 %v492, %v497
    %v502 = vadd.f32 %v493, %v498
    %v503 = vadd.f32 %v494, %v499
    %v504 = vadd.f32 %v495, %v500
    %v505 = vstv %s76
    %v506 = vadd.f32 %v501, %v505
    %v507 = vadd.f32 %v502, %v505
    %v508 = vadd.f32 %v503, %v505
    %v509 = vadd.f32 %v504, %v505
    %v510 = vmax.f32 %v506, 0.0
    %v511 = vmax.f32 %v507, 0.0
    %v512 = vmax.f32 %v508, 0.0
    %v513 = vmax.f32 %v509, 0.0
    %s514 = scalar_lea.vmem %s1, 192
    %v515 = vld [vmem:[%s514] sm:$0xff]
    %v516 = vld [vmem:[%s514 + $0x8] sm:$0xff]
    %v517 = vld [vmem:[%s514 + $0x10] sm:$0xff]
    %v518 = vld [vmem:[%s514 + $0x18] sm:$0xff]
    %520 = vset.pattern.permute.xlu0 0
    %521 = vperm.xlu0 %520, %v515
    %v522 = vpop.permute.xlu0 %521
    %525 = vset.pattern.permute.xlu0 0
    %526 = vperm.xlu0 %525, %v516
    %v527 = vpop.permute.xlu0 %526
    %530 = vset.pattern.permute.xlu0 0
    %531 = vperm.xlu0 %530, %v517
    %v532 = vpop.permute.xlu0 %531
    %535 = vset.pattern.permute.xlu0 0
    %536 = vperm.xlu0 %535, %v518
    %v537 = vpop.permute.xlu0 %536
    %v539 = vmul.f32 %v510, %v522
    %v540 = vmul.f32 %v511, %v527
    %v541 = vmul.f32 %v512, %v532
    %v542 = vmul.f32 %v513, %v537
    %v543 = vadd.f32 %v478, %v539
    %v544 = vadd.f32 %v479, %v540
    %v545 = vadd.f32 %v480, %v541
    %v546 = vadd.f32 %v481, %v542
    %v547 = vstv %s67
    %v548 = vmul.f32 %v79, %v547
    %v549 = vmul.f32 %v80, %v547
    %v550 = vmul.f32 %v81, %v547
    %v551 = vmul.f32 %v82, %v547
    %v552 = vstv %s68
    %v553 = vmul.f32 %v84, %v552
    %v554 = vmul.f32 %v85, %v552
    %v555 = vmul.f32 %v86, %v552
    %v556 = vmul.f32 %v87, %v552
    %v557 = vadd.f32 %v548, %v553
    %v558 = vadd.f32 %v549, %v554
    %v559 = vadd.f32 %v550, %v555
    %v560 = vadd.f32 %v551, %v556
    %v561 = vstv %s69
    %v562 = vmul.f32 %v89, %v561
    %v563 = vmul.f32 %v90, %v561
    %v564 = vmul.f32 %v91, %v561
    %v565 = vmul.f32 %v92, %v561
    %v566 = vadd.f32 %v557, %v562
    %v567 = vadd.f32 %v558, %v563
    %v568 = vadd.f32 %v559, %v564
    %v569 = vadd.f32 %v560, %v565
    %v570 = vstv %s77
    %v571 = vadd.f32 %v566, %v570
    %v572 = vadd.f32 %v567, %v570
    %v573 = vadd.f32 %v568, %v570
    %v574 = vadd.f32 %v569, %v570
    %v575 = vmax.f32 %v571, 0.0
    %v576 = vmax.f32 %v572, 0.0
    %v577 = vmax.f32 %v573, 0.0
    %v578 = vmax.f32 %v574, 0.0
    %s579 = scalar_lea.vmem %s1, 224
    %v580 = vld [vmem:[%s579] sm:$0xff]
    %v581 = vld [vmem:[%s579 + $0x8] sm:$0xff]
    %v582 = vld [vmem:[%s579 + $0x10] sm:$0xff]
    %v583 = vld [vmem:[%s579 + $0x18] sm:$0xff]
    %585 = vset.pattern.permute.xlu0 0
    %586 = vperm.xlu0 %585, %v580
    %v587 = vpop.permute.xlu0 %586
    %590 = vset.pattern.permute.xlu0 0
    %591 = vperm.xlu0 %590, %v581
    %v592 = vpop.permute.xlu0 %591
    %595 = vset.pattern.permute.xlu0 0
    %596 = vperm.xlu0 %595, %v582
    %v597 = vpop.permute.xlu0 %596
    %600 = vset.pattern.permute.xlu0 0
    %601 = vperm.xlu0 %600, %v583
    %v602 = vpop.permute.xlu0 %601
    %v604 = vmul.f32 %v575, %v587
    %v605 = vmul.f32 %v576, %v592
    %v606 = vmul.f32 %v577, %v597
    %v607 = vmul.f32 %v578, %v602
    %v608 = vadd.f32 %v543, %v604
    %v609 = vadd.f32 %v544, %v605
    %v610 = vadd.f32 %v545, %v606
    %v611 = vadd.f32 %v546, %v607
    %v612 = vadd.f32 %v608, %v609
    %v613 = vadd.f32 %v612, %v610
    %v614 = vadd.f32 %v613, %v611
    %v615 = vrot.slane %v614, 4
    %v616 = vadd.f32 %v614, %v615
    %v617 = vrot.slane %v616, 2
    %v618 = vadd.f32 %v616, %v617
    %v619 = vrot.slane %v618, 1
    %v620 = vadd.f32 %v618, %v619
    %v621 = vstv %s78
    %v622 = vadd.f32 %v620, %v621
    %623 = vst [vmem:[%s5] sm:$0x1] %v622
    // Predicated region
    $region30: #{convkb_forward.1} parent=1 // pred_check
      _
    $region31: #{convkb_forward.1} parent=1 // pred_check_branch
      %625 = sbr.rel (0) target = $region33
    $region32: #{convkb_forward.1} parent=1 // pred_region
      _
    $region33: #{convkb_forward.1} parent=1 // pred_fallthru
      _
    // Predicated region
    $region34: #{convkb_forward.1} parent=1 // pred_check
      _
    $region35: #{convkb_forward.1} parent=1 // pred_check_branch
      %627 = sbr.rel (0) target = $region37
    $region36: #{convkb_forward.1} parent=1 // pred_region
      _
    $region37: #{convkb_forward.1} parent=1 // pred_fallthru
      _
    %628 = vsyncpa [#allocation4], 1
    %629 = vsyncpa [#allocation6], 1

</llo_original>
